<compile_context>
chip_gen: v5e
topology: v5e:2x2
jax: 0.10.0
libtpu: 0.0.40
codegen_flags: <defaults>
</compile_context>

<pallas_src>
import functools

import jax
import jax.numpy as jnp
from jax import lax
from jax.experimental import pallas as pl
from jax.experimental.pallas import tpu as pltpu


def _round_up(x, m):
    return ((x + m - 1) // m) * m


def _cdiv(a, b):
    return -(-a // b)


def _con_loss_kernel(kp_ref, pred_ref, out_ref, *, batch, chunk):
    """Per-(iteration*batch, HW-tile) consistency-loss partial sums.

    kp_ref   : (B, C*K) f32 in SMEM — per batch: [kp_hat_c0(K) .. kp_hat_c{C-1}(K)]
               (keypoint flows pre-normalized in glue).
    pred_ref : (C, tile_rows, 128) source-dtype VMEM tile (lane-dense spatial layout).
    out_ref  : (8, 128) f32 — running partial sum of -|pred| * max_k cos_hat.
    """
    nb = pl.program_id(0)
    t = pl.program_id(1)
    b = nb % batch

    C = pred_ref.shape[0]
    K = kp_ref.shape[1] // C
    tile_rows = pred_ref.shape[1]
    n_chunks = tile_rows // chunk

    @pl.when(t == 0)
    def _():
        out_ref[...] = jnp.zeros_like(out_ref)

    # Hoist all C*K SMEM scalar reads once per grid step (outside K/chunk loops).
    kp_hat = [[kp_ref[b, c * K + k] for k in range(K)] for c in range(C)]

    def chunk_body(i, acc):
        start = pl.multiple_of(i * chunk, chunk)
        # Per-channel chunk loads; upcast to f32 in-register (source may be bf16).
        ch = [pred_ref[c, pl.ds(start, chunk), :].astype(jnp.float32)
              for c in range(C)]

        mag = ch[0] * ch[0]
        for c in range(1, C):
            mag = mag + ch[c] * ch[c]
        p_norm = jnp.sqrt(mag)                       # single EUP op per chunk

        sim = None
        for k in range(K):                           # K small -> static unroll
            d = ch[0] * kp_hat[0][k]
            for c in range(1, C):
                d = d + ch[c] * kp_hat[c][k]
            sim = d if sim is None else jnp.maximum(sim, d)

        # -|pred|^2 * dot/(|pred||kp|) == -|pred| * dot_hat  (no division needed).
        contrib = -p_norm * sim                      # (chunk, 128); 0 on padded pixels
        # Vreg-aligned sublane-group fold: plain VALU adds, no XLU.
        partial = jnp.sum(contrib.reshape(chunk // 8, 8, 128), axis=0)
        return acc + partial

    acc = lax.fori_loop(0, n_chunks, chunk_body,
                        jnp.zeros((8, 128), jnp.float32))
    out_ref[...] += acc


def con_loss_forward(pred_flows, skls, flow, gamma, *,
                     chunk_rows=32, max_tile_rows=1024):
    """ConLoss.forward: sum_i gamma^(n-1-i) * mean(-|pred_i|^2 * max_k cos(pred_i, kp_flow_k))."""
    if isinstance(pred_flows, (list, tuple)):
        n_iters = len(pred_flows)
        pred = jnp.stack(pred_flows, axis=0)         # (N, B, C, H, W), source dtype
    else:
        pred = pred_flows                            # already stacked (N, B, C, H, W)
        n_iters = pred.shape[0]
    N, B, C, H, W = pred.shape
    K = skls.shape[1]
    HW = H * W

    # --- keypoint flow gather + normalization, computed ONCE for all iters ---
    # TODO(synk): the data-dependent gather flow[b, :, y_k, x_k] stays in JAX
    # glue (K is tiny; JAX clamps out-of-range coords silently).
    kp_x = skls[:, :, 0].astype(jnp.int32)                       # (B, K)
    kp_y = skls[:, :, 1].astype(jnp.int32)                       # (B, K)
    b_idx = jnp.arange(B)[:, None]
    kpf = flow[b_idx, :, kp_y, kp_x].astype(jnp.float32)         # (B, K, C)
    kp_norm = jnp.sqrt(jnp.sum(kpf * kpf, axis=-1, keepdims=True))
    kp_hat = kpf / (kp_norm + 1e-6)                              # (B, K, C), eps-guarded
    kp_smem = jnp.concatenate(
        [kp_hat[:, :, c] for c in range(C)], axis=1)             # (B, C*K) f32

    # --- spatial layout: lane-dense (rows, 128), balanced tiles, minimal pad ---
    rows = _cdiv(HW, 128)
    rows_c = _round_up(rows, chunk_rows)                  # chunk-aligned row count
    n_tiles = _cdiv(rows_c, max_tile_rows)
    tile_rows = _round_up(_cdiv(rows_c, n_tiles), chunk_rows)    # balanced, chunk-aligned
    rows_pad = n_tiles * tile_rows                        # waste < chunk_rows per tile

    pred = pred.reshape(N * B, C, HW)                     # keep source dtype (bf16 ok)
    pad = rows_pad * 128 - HW
    if pad:
        # Zero-padded pixels contribute exactly 0: p_norm = 0 -> contrib = 0 (no NaN).
        pred = jnp.pad(pred, ((0, 0), (0, 0), (0, pad)))
    pred = pred.reshape(N * B, C, rows_pad, 128)

    partial = pl.pallas_call(
        functools.partial(_con_loss_kernel, batch=B, chunk=chunk_rows),
        out_shape=jax.ShapeDtypeStruct((N * B, 8, 128), jnp.float32),
        grid_spec=pltpu.PrefetchScalarGridSpec(
            num_scalar_prefetch=0,
            grid=(N * B, n_tiles),
            in_specs=[
                pl.BlockSpec(memory_space=pltpu.MemorySpace.SMEM),   # keypoint scalars
                pl.BlockSpec((None, C, tile_rows, 128),
                             lambda nb, t: (nb, 0, t, 0)),           # pred tile
            ],
            out_specs=pl.BlockSpec((None, 8, 128),
                                   lambda nb, t: (nb, 0, 0)),
        ),
        compiler_params=pltpu.CompilerParams(
            dimension_semantics=("parallel", "arbitrary")),
    )(kp_smem, pred)

    # Tiny final reduction + per-iteration mean + gamma weighting in glue.
    per_iter = jnp.sum(partial.reshape(N, B, 8, 128), axis=(1, 2, 3)) \
        / jnp.float32(B * H * W)                                     # (N,)
    weights = jnp.asarray(
        [gamma ** (N - i - 1) for i in range(N)], dtype=jnp.float32)
    return jnp.sum(weights * per_iter)


def con_loss_reference(pred_flows, skls, flow, gamma):
    """Pure-JAX reference mirroring the PyTorch module (exact division)."""
    n_iters = len(pred_flows)
    B = flow.shape[0]
    kp_x = skls[:, :, 0].astype(jnp.int32)
    kp_y = skls[:, :, 1].astype(jnp.int32)
    b_idx = jnp.arange(B)[:, None]
    kp_flows = flow[b_idx, :, kp_y, kp_x].astype(jnp.float32)        # (B, K, C)
    loss = jnp.float32(0.0)
    for i, pf in enumerate(pred_flows):
        pf = pf.astype(jnp.float32)
        w = gamma ** (n_iters - i - 1)
        kpf = kp_flows[:, :, :, None, None]                          # (B, K, C, 1, 1)
        pfe = pf[:, None]                                            # (B, 1, C, H, W)
        dot = jnp.sum(pfe * kpf, axis=2)                             # (B, K, H, W)
        p_norm = jnp.sqrt(jnp.sum(pf * pf, axis=1))                  # (B, H, W)
        kp_norm = jnp.sqrt(jnp.sum(kp_flows * kp_flows, axis=2))     # (B, K)
        sim = dot / (p_norm[:, None] * kp_norm[:, :, None, None] + 1e-6)
        sim_max = jnp.max(sim, axis=1)                               # (B, H, W)
        mag = p_norm ** 2
        loss = loss + w * jnp.mean(-mag * sim_max)
    return loss


def _make_inputs(key, n_iters, B, C, H, W, K):
    keys = jax.random.split(key, n_iters + 3)
    pred_flows = [
        jax.random.normal(keys[i], (B, C, H, W), dtype=jnp.float32)
        for i in range(n_iters)
    ]
    flow = jax.random.normal(keys[n_iters], (B, C, H, W), dtype=jnp.float32)
    kp_x = jax.random.randint(keys[n_iters + 1], (B, K, 1), 0, W)
    kp_y = jax.random.randint(keys[n_iters + 2], (B, K, 1), 0, H)
    skls = jnp.concatenate([kp_x, kp_y], axis=-1).astype(jnp.float32)  # (x, y)
    return pred_flows, skls, flow


if __name__ == "__main__":
    gamma = 0.8
    key = jax.random.PRNGKey(0)
    k1, k2 = jax.random.split(key)

    # Case 1: small aligned shapes (as implied by the module).
    pred_flows, skls, flow = _make_inputs(k1, n_iters=3, B=2, C=2, H=16, W=16, K=8)
    loss = jax.block_until_ready(con_loss_forward(pred_flows, skls, flow, gamma))
    ref = con_loss_reference(pred_flows, skls, flow, gamma)
    assert jnp.allclose(loss, ref, rtol=2e-3, atol=2e-3), (loss, ref)

    # Case 2: ragged spatial size (exercises lane/row padding path).
    pred_flows2, skls2, flow2 = _make_inputs(k2, n_iters=2, B=2, C=2, H=19, W=27, K=5)
    loss2 = jax.block_until_ready(con_loss_forward(pred_flows2, skls2, flow2, gamma))
    ref2 = con_loss_reference(pred_flows2, skls2, flow2, gamma)
    assert jnp.allclose(loss2, ref2, rtol=2e-3, atol=2e-3), (loss2, ref2)

    print("KERNEL_OK")
</pallas_src>

<mosaic_0001>
module attributes {stable_mosaic.version = 11 : i64} {
  func.func @_con_loss_kernel(%arg0: i32, %arg1: i32, %arg2: memref<2x16xf32, #tpu.memory_space<smem>>, %arg3: memref<1x2x32x128xf32, #tpu.memory_space<vmem>>, %arg4: memref<1x8x128xf32, #tpu.memory_space<vmem>>) attributes {dimension_semantics = [#tpu.dimension_semantics<parallel>, #tpu.dimension_semantics<arbitrary>], iteration_bounds = array<i64: 6, 1>, scalar_prefetch = 0 : i64, scratch_operands = 0 : i64, tpu.core_type = #tpu.core_type<tc>, window_params = [{transform_indices = @transform_0, window_bounds = array<i64: 2, 16>}, {transform_indices = @transform_1, window_bounds = array<i64: 1, 2, 32, 128>}, {transform_indices = @transform_2, window_bounds = array<i64: 1, 8, 128>}]} {
    %c2_i32 = arith.constant 2 : i32
    %c0_i32 = arith.constant 0 : i32
    %0 = arith.cmpi eq, %c2_i32, %c0_i32 : i32
    %c1_i32 = arith.constant 1 : i32
    %1 = arith.select %0, %c1_i32, %c2_i32 : i32
    %2 = arith.remsi %arg0, %1 : i32
    %c0_i32_0 = arith.constant 0 : i32
    %3 = arith.cmpi ne, %2, %c0_i32_0 : i32
    %c0_i32_1 = arith.constant 0 : i32
    %4 = arith.cmpi slt, %2, %c0_i32_1 : i32
    %c0_i32_2 = arith.constant 0 : i32
    %5 = arith.cmpi slt, %1, %c0_i32_2 : i32
    %6 = arith.xori %4, %5 : i1
    %7 = arith.andi %6, %3 : i1
    %8 = arith.addi %2, %1 : i32
    %9 = arith.select %7, %8, %2 : i32
    %c0_i32_3 = arith.constant 0 : i32
    %10 = arith.cmpi eq, %arg1, %c0_i32_3 : i32
    %11 = arith.extui %10 : i1 to i32
    %c0_i32_4 = arith.constant 0 : i32
    %12 = arith.cmpi ne, %11, %c0_i32_4 : i32
    scf.if %12 {
      %cst_21 = arith.constant 0.000000e+00 : f32
      %117 = vector.broadcast %cst_21 : f32 to vector<8x128xf32>
      %c0_22 = arith.constant 0 : index
      %c0_23 = arith.constant 0 : index
      %c0_24 = arith.constant 0 : index
      %118 = vector.load %arg4[%c0_22, %c0_23, %c0_24] : memref<1x8x128xf32, #tpu.memory_space<vmem>>, vector<1x8x128xf32>
      %119 = vector.shape_cast %118 : vector<1x8x128xf32> to vector<8x128xf32>
      %120 = vector.shape_cast %117 : vector<8x128xf32> to vector<1x8x128xf32>
      tpu.vector_store %arg4[%c0_22, %c0_23, %c0_24], %120 {strides = array<i32>} : memref<1x8x128xf32, #tpu.memory_space<vmem>>, vector<1x8x128xf32>,
    } else {
    }
    %13 = arith.index_cast %9 : i32 to index
    %c0 = arith.constant 0 : index
    %14 = memref.load %arg2[%13, %c0] : memref<2x16xf32, #tpu.memory_space<smem>>
    %15 = arith.index_cast %9 : i32 to index
    %c1 = arith.constant 1 : index
    %16 = memref.load %arg2[%15, %c1] : memref<2x16xf32, #tpu.memory_space<smem>>
    %17 = arith.index_cast %9 : i32 to index
    %c2 = arith.constant 2 : index
    %18 = memref.load %arg2[%17, %c2] : memref<2x16xf32, #tpu.memory_space<smem>>
    %19 = arith.index_cast %9 : i32 to index
    %c3 = arith.constant 3 : index
    %20 = memref.load %arg2[%19, %c3] : memref<2x16xf32, #tpu.memory_space<smem>>
    %21 = arith.index_cast %9 : i32 to index
    %c4 = arith.constant 4 : index
    %22 = memref.load %arg2[%21, %c4] : memref<2x16xf32, #tpu.memory_space<smem>>
    %23 = arith.index_cast %9 : i32 to index
    %c5 = arith.constant 5 : index
    %24 = memref.load %arg2[%23, %c5] : memref<2x16xf32, #tpu.memory_space<smem>>
    %25 = arith.index_cast %9 : i32 to index
    %c6 = arith.constant 6 : index
    %26 = memref.load %arg2[%25, %c6] : memref<2x16xf32, #tpu.memory_space<smem>>
    %27 = arith.index_cast %9 : i32 to index
    %c7 = arith.constant 7 : index
    %28 = memref.load %arg2[%27, %c7] : memref<2x16xf32, #tpu.memory_space<smem>>
    %29 = arith.index_cast %9 : i32 to index
    %c8 = arith.constant 8 : index
    %30 = memref.load %arg2[%29, %c8] : memref<2x16xf32, #tpu.memory_space<smem>>
    %31 = arith.index_cast %9 : i32 to index
    %c9 = arith.constant 9 : index
    %32 = memref.load %arg2[%31, %c9] : memref<2x16xf32, #tpu.memory_space<smem>>
    %33 = arith.index_cast %9 : i32 to index
    %c10 = arith.constant 10 : index
    %34 = memref.load %arg2[%33, %c10] : memref<2x16xf32, #tpu.memory_space<smem>>
    %35 = arith.index_cast %9 : i32 to index
    %c11 = arith.constant 11 : index
    %36 = memref.load %arg2[%35, %c11] : memref<2x16xf32, #tpu.memory_space<smem>>
    %37 = arith.index_cast %9 : i32 to index
    %c12 = arith.constant 12 : index
    %38 = memref.load %arg2[%37, %c12] : memref<2x16xf32, #tpu.memory_space<smem>>
    %39 = arith.index_cast %9 : i32 to index
    %c13 = arith.constant 13 : index
    %40 = memref.load %arg2[%39, %c13] : memref<2x16xf32, #tpu.memory_space<smem>>
    %41 = arith.index_cast %9 : i32 to index
    %c14 = arith.constant 14 : index
    %42 = memref.load %arg2[%41, %c14] : memref<2x16xf32, #tpu.memory_space<smem>>
    %43 = arith.index_cast %9 : i32 to index
    %c15 = arith.constant 15 : index
    %44 = memref.load %arg2[%43, %c15] : memref<2x16xf32, #tpu.memory_space<smem>>
    %cst = arith.constant 0.000000e+00 : f32
    %45 = vector.broadcast %cst : f32 to vector<8x128xf32>
    %c0_i32_5 = arith.constant 0 : i32
    %c32_i32 = arith.constant 32 : i32
    %46 = arith.muli %c0_i32_5, %c32_i32 : i32
    %47 = tpu.assume_multiple %46, 32 : i32
    %c0_6 = arith.constant 0 : index
    %c0_7 = arith.constant 0 : index
    %48 = arith.index_cast %47 : i32 to index
    %c0_8 = arith.constant 0 : index
    %49 = vector.load %arg3[%c0_6, %c0_7, %48, %c0_8] : memref<1x2x32x128xf32, #tpu.memory_space<vmem>>, vector<1x1x32x128xf32>
    %50 = vector.shape_cast %49 : vector<1x1x32x128xf32> to vector<32x128xf32>
    %c0_9 = arith.constant 0 : index
    %c1_10 = arith.constant 1 : index
    %51 = arith.index_cast %47 : i32 to index
    %c0_11 = arith.constant 0 : index
    %52 = vector.load %arg3[%c0_9, %c1_10, %51, %c0_11] : memref<1x2x32x128xf32, #tpu.memory_space<vmem>>, vector<1x1x32x128xf32>
    %53 = vector.shape_cast %52 : vector<1x1x32x128xf32> to vector<32x128xf32>
    %54 = arith.mulf %50, %50 : vector<32x128xf32>
    %55 = arith.mulf %53, %53 : vector<32x128xf32>
    %56 = arith.addf %54, %55 : vector<32x128xf32>
    %57 = math.sqrt %56 : vector<32x128xf32>
    %58 = vector.broadcast %14 : f32 to vector<32x128xf32>
    %59 = arith.mulf %50, %58 : vector<32x128xf32>
    %60 = vector.broadcast %30 : f32 to vector<32x128xf32>
    %61 = arith.mulf %53, %60 : vector<32x128xf32>
    %62 = arith.addf %59, %61 : vector<32x128xf32>
    %63 = vector.broadcast %16 : f32 to vector<32x128xf32>
    %64 = arith.mulf %50, %63 : vector<32x128xf32>
    %65 = vector.broadcast %32 : f32 to vector<32x128xf32>
    %66 = arith.mulf %53, %65 : vector<32x128xf32>
    %67 = arith.addf %64, %66 : vector<32x128xf32>
    %68 = arith.maximumf %62, %67 : vector<32x128xf32>
    %69 = vector.broadcast %18 : f32 to vector<32x128xf32>
    %70 = arith.mulf %50, %69 : vector<32x128xf32>
    %71 = vector.broadcast %34 : f32 to vector<32x128xf32>
    %72 = arith.mulf %53, %71 : vector<32x128xf32>
    %73 = arith.addf %70, %72 : vector<32x128xf32>
    %74 = arith.maximumf %68, %73 : vector<32x128xf32>
    %75 = vector.broadcast %20 : f32 to vector<32x128xf32>
    %76 = arith.mulf %50, %75 : vector<32x128xf32>
    %77 = vector.broadcast %36 : f32 to vector<32x128xf32>
    %78 = arith.mulf %53, %77 : vector<32x128xf32>
    %79 = arith.addf %76, %78 : vector<32x128xf32>
    %80 = arith.maximumf %74, %79 : vector<32x128xf32>
    %81 = vector.broadcast %22 : f32 to vector<32x128xf32>
    %82 = arith.mulf %50, %81 : vector<32x128xf32>
    %83 = vector.broadcast %38 : f32 to vector<32x128xf32>
    %84 = arith.mulf %53, %83 : vector<32x128xf32>
    %85 = arith.addf %82, %84 : vector<32x128xf32>
    %86 = arith.maximumf %80, %85 : vector<32x128xf32>
    %87 = vector.broadcast %24 : f32 to vector<32x128xf32>
    %88 = arith.mulf %50, %87 : vector<32x128xf32>
    %89 = vector.broadcast %40 : f32 to vector<32x128xf32>
    %90 = arith.mulf %53, %89 : vector<32x128xf32>
    %91 = arith.addf %88, %90 : vector<32x128xf32>
    %92 = arith.maximumf %86, %91 : vector<32x128xf32>
    %93 = vector.broadcast %26 : f32 to vector<32x128xf32>
    %94 = arith.mulf %50, %93 : vector<32x128xf32>
    %95 = vector.broadcast %42 : f32 to vector<32x128xf32>
    %96 = arith.mulf %53, %95 : vector<32x128xf32>
    %97 = arith.addf %94, %96 : vector<32x128xf32>
    %98 = arith.maximumf %92, %97 : vector<32x128xf32>
    %99 = vector.broadcast %28 : f32 to vector<32x128xf32>
    %100 = arith.mulf %50, %99 : vector<32x128xf32>
    %101 = vector.broadcast %44 : f32 to vector<32x128xf32>
    %102 = arith.mulf %53, %101 : vector<32x128xf32>
    %103 = arith.addf %100, %102 : vector<32x128xf32>
    %104 = arith.maximumf %98, %103 : vector<32x128xf32>
    %cst_12 = arith.constant 0.000000e+00 : f32
    %105 = vector.broadcast %cst_12 : f32 to vector<32x128xf32>
    %106 = arith.subf %105, %57 : vector<32x128xf32>
    %107 = arith.mulf %106, %104 : vector<32x128xf32>
    %108 = vector.shape_cast %107 : vector<32x128xf32> to vector<4x8x128xf32>
    %cst_13 = arith.constant dense<0.000000e+00> : vector<8x128xf32>
    %109 = vector.multi_reduction <add>, %108, %cst_13 [0] : vector<4x8x128xf32> to vector<8x128xf32>
    %110 = arith.addf %45, %109 : vector<8x128xf32>
    %c1_i32_14 = arith.constant 1 : i32
    %c0_15 = arith.constant 0 : index
    %c0_16 = arith.constant 0 : index
    %c0_17 = arith.constant 0 : index
    %111 = vector.load %arg4[%c0_15, %c0_16, %c0_17] : memref<1x8x128xf32, #tpu.memory_space<vmem>>, vector<1x8x128xf32>
    %112 = vector.shape_cast %111 : vector<1x8x128xf32> to vector<8x128xf32>
    %113 = arith.addf %112, %110 : vector<8x128xf32>
    %c0_18 = arith.constant 0 : index
    %c0_19 = arith.constant 0 : index
    %c0_20 = arith.constant 0 : index
    %114 = vector.load %arg4[%c0_18, %c0_19, %c0_20] : memref<1x8x128xf32, #tpu.memory_space<vmem>>, vector<1x8x128xf32>
    %115 = vector.shape_cast %114 : vector<1x8x128xf32> to vector<8x128xf32>
    %116 = vector.shape_cast %113 : vector<8x128xf32> to vector<1x8x128xf32>
    tpu.vector_store %arg4[%c0_18, %c0_19, %c0_20], %116 {strides = array<i32>} : memref<1x8x128xf32, #tpu.memory_space<vmem>>, vector<1x8x128xf32>,
    return
  }
  func.func @transform_0(%arg0: i32, %arg1: i32) -> (i32, i32) {
    %c0_i32 = arith.constant 0 : i32
    %c0_i32_0 = arith.constant 0 : i32
    %c0_i32_1 = arith.constant 0 : i32
    return %c0_i32, %c0_i32_0 : i32, i32
  }
  func.func @transform_1(%arg0: i32, %arg1: i32) -> (i32, i32, i32, i32) {
    %c0_i32 = arith.constant 0 : i32
    %c0_i32_0 = arith.constant 0 : i32
    %c0_i32_1 = arith.constant 0 : i32
    return %arg0, %c0_i32, %arg1, %c0_i32_0 : i32, i32, i32, i32
  }
  func.func @transform_2(%arg0: i32, %arg1: i32) -> (i32, i32, i32) {
    %c0_i32 = arith.constant 0 : i32
    %c0_i32_0 = arith.constant 0 : i32
    %c0_i32_1 = arith.constant 0 : i32
    return %arg0, %c0_i32, %c0_i32_0 : i32, i32, i32
  }
}

</mosaic_0001>

<llo_original>
// kernel: tpu_custom_call.1
$region0: #{tpu_custom_call.1}
  #allocation0 [shape = 'u32[]', space=smem, size = 0x4, offset = 0x4, fixed_abs, tag = 'smem constant byte address 0x4 - core index']
  #allocation1 [shape = 'u32[72,128]{1,0:T(1,128)}', space=vmem, size = 0x9000, scoped, tag = 'internal scratch']
  %s0 = inlined_call_operand.hbm [shape: f32[2,16], index: 0, kind: input, shape index: {}]
  %s1 = inlined_call_operand.hbm [shape: f32[6,2,32,128], index: 1, kind: input, shape index: {}]
  %s2 = inlined_call_operand.hbm [shape: f32[6,8,128], index: 2, kind: output, shape index: {}]
  %s3 = sld [smem:[#allocation0]]
  $region53: #{tpu_custom_call.1} parent=0
    _
  %s5 = ssub.s32 1, %s3
  %s6 = scalar_select 0, %s5, %s3
  $region1: #{tpu_custom_call.1} parent=0
    #allocation2 [shape = 'u8[1024]{0}', space=smem, size = 0x400, scoped, tag = 'input window, operand 0, single buffered']
    #allocation3 [shape = 's32[2]{0}', space=sflag, size = 0x8, scoped, tag = 'scoped memory for tpu_custom_call.1']
    #allocation4 [shape = 's32[2]{0}', space=sflag, size = 0x8, scoped, tag = 'scoped memory for tpu_custom_call.1']
    #allocation5 [shape = 's32[2]{0}', space=sflag, size = 0x8, scoped, tag = 'scoped memory for tpu_custom_call.1']
    #allocation6 [shape = 'u8[65536]{0}', space=vmem, size = 0x10000, scoped, tag = 'input window, operand 1']
    #allocation7 [shape = 'u8[8192]{0}', space=vmem, size = 0x2000, scoped, tag = 'output window, operand 0']
    %7 = vsyncpa [#allocation5], 0
    %8 = vsyncpa [#allocation3], 0
    %s9 = scalar_lea.sflag [#allocation3], 1
    %10 = vsyncpa %s9, 0
    %11 = vsyncpa [#allocation4], 0
    %s12 = scalar_lea.sflag [#allocation4], 1
    %13 = vsyncpa %s12, 0
    loop: start=0, step=1, limit=8
    $region2: #{tpu_custom_call.1} parent=1 // loop_pre_header
      _
    $region3: #{tpu_custom_call.1} parent=1 // loop_header
      %s15 = sphi 0, %s19
      %p16 = scmp.ge.s32.totalorder %s15, 8
      %s22 = sphi 0, %s34
      %s23 = sphi 0, %s30
      %s24 = sphi 0, %s22
      %s25 = sphi 0, %s23
      %s26 = sphi 0, %s24
      %s27 = sphi 0, %s25
      %s35 = sphi 0, %s35
      %s37 = sphi 0, %s35
      %s38 = sphi 0, %s37
      %s52 = sphi 0, %s38
      %s60 = sphi 0, %s62
      %s63 = sphi 0, %s60
      %s64 = sphi 0, %s63
      %s80 = sphi 0, %s64
      %s86 = sphi 0, %s88
      %s89 = sphi 0, %s86
      %s90 = sphi 0, %s89
      %s106 = sphi 0, %s90
    $region4: #{tpu_custom_call.1} parent=1 // loop_header_branch
      %18 = sbr.rel (%p16) target = $region8
    $region5: #{tpu_custom_call.1} parent=1 // loop_body
      %s20 = ssub.s32 %s15, 1
      %s21 = ssub.s32 %s15, 2
      %s28 = sadd.s32 1, %s23
      %p29 = scmp.ge.s32.totalorder %s28, 1
      %s30 = scalar_select %p29, 0, %s28
      %s31 = sadd.s32 1, %s22
      %s32 = scalar_select %p29, %s31, %s22
      %p33 = scmp.ge.s32.totalorder %s32, 6
      %s34 = scalar_select %p33, 0, %s32
      %s36 = sadd.s32 %s35, 1
      %p39 = scmp.eq.s32.totalorder %s15, 5
      %p40 = scmp.ne.s32.totalorder %s35, %s37
      %p41 = scmp.eq.s32.totalorder %s15, 0
      %p42 = por %p40, %p41
      %p43 = scmp.ne.s32.totalorder %s35, %s37
      %p44 = scmp.eq.s32.totalorder %s20, 5
      %p45 = por %p43, %p44
      %p46 = scmp.ne.s32.totalorder %s37, %s38
      %p47 = scmp.eq.s32.totalorder %s20, 0
      %p48 = por %p46, %p47
      %p49 = scmp.ne.s32.totalorder %s37, %s38
      %p50 = scmp.eq.s32.totalorder %s21, 5
      %p51 = por %p49, %p50
      %p53 = scmp.ne.s32.totalorder %s38, %s52
      %p54 = scmp.eq.s32.totalorder %s21, 0
      %p55 = por %p53, %p54
      %s56 = ssub.s32 %s22, %s34
      %s57 = ssub.s32 %s23, %s30
      %s58 = sor.u32 %s56, %s57
      %p59 = scmp.eq.s32.totalorder %s58, 0
      %s61 = sadd.s32 %s60, 1
      %s62 = scalar_select %p59, %s60, %s61
      %p65 = pneg %p59
      %p66 = scmp.eq.s32.totalorder %s15, 5
      %p67 = por %p65, %p66
      %p68 = scmp.ne.s32.totalorder %s60, %s63
      %p69 = scmp.eq.s32.totalorder %s15, 0
      %p70 = por %p68, %p69
      %p71 = scmp.ne.s32.totalorder %s60, %s63
      %p72 = scmp.eq.s32.totalorder %s20, 5
      %p73 = por %p71, %p72
      %p74 = scmp.ne.s32.totalorder %s63, %s64
      %p75 = scmp.eq.s32.totalorder %s20, 0
      %p76 = por %p74, %p75
      %p77 = scmp.ne.s32.totalorder %s63, %s64
      %p78 = scmp.eq.s32.totalorder %s21, 5
      %p79 = por %p77, %p78
      %p81 = scmp.ne.s32.totalorder %s64, %s80
      %p82 = scmp.eq.s32.totalorder %s21, 0
      %p83 = por %p81, %p82
      %s84 = ssub.s32 %s22, %s34
      %p85 = scmp.eq.s32.totalorder %s84, 0
      %s87 = sadd.s32 %s86, 1
      %s88 = scalar_select %p85, %s86, %s87
      %p91 = pneg %p85
      %p92 = scmp.eq.s32.totalorder %s15, 5
      %p93 = por %p91, %p92
      %p94 = scmp.ne.s32.totalorder %s86, %s89
      %p95 = scmp.eq.s32.totalorder %s15, 0
      %p96 = por %p94, %p95
      %p97 = scmp.ne.s32.totalorder %s86, %s89
      %p98 = scmp.eq.s32.totalorder %s20, 5
      %p99 = por %p97, %p98
      %p100 = scmp.ne.s32.totalorder %s89, %s90
      %p101 = scmp.eq.s32.totalorder %s20, 0
      %p102 = por %p100, %p101
      %p103 = scmp.ne.s32.totalorder %s89, %s90
      %p104 = scmp.eq.s32.totalorder %s21, 5
      %p105 = por %p103, %p104
      %p107 = scmp.ne.s32.totalorder %s90, %s106
      %p108 = scmp.eq.s32.totalorder %s21, 0
      %p109 = por %p107, %p108
      %p110 = scmp.le.s32.totalorder 1, %s15
      %p111 = scmp.lt.s32.totalorder %s15, 7
      %p112 = pnand %p110, %p111
      %p113 = pneg %p112
      // Predicated region
      $region9: #{tpu_custom_call.1} parent=5 // pred_check
        _
      $region10: #{tpu_custom_call.1} parent=5 // pred_check_branch
        %115 = sbr.rel (%p112) target = $region12
      $region11: #{tpu_custom_call.1} parent=5 // pred_region
        %s116 = ssub.s32 %s15, 1
        // Predicated region
        $region13: #{tpu_custom_call.1} parent=11 // pred_check
          %p117 = pneg %p48
        $region14: #{tpu_custom_call.1} parent=11 // pred_check_branch
          %119 = sbr.rel (%p117) target = $region16
        $region15: #{tpu_custom_call.1} parent=11 // pred_region
          %121 = vsyncadd [#allocation5], 0
          %s123 = sshll.u32 %s0, 4
          %s124 = int_to_ptr.hbm [resolvable:$true] %s123
          %126 = dma.hbm_to_smem %s124, 32, [#allocation2], [#allocation5]
        $region16: #{tpu_custom_call.1} parent=11 // pred_fallthru
          _
      $region12: #{tpu_custom_call.1} parent=5 // pred_fallthru
        _
      %p127 = scmp.lt.s32.totalorder %s15, 6
      // Predicated region
      $region17: #{tpu_custom_call.1} parent=5 // pred_check
        %p128 = pneg %p127
      $region18: #{tpu_custom_call.1} parent=5 // pred_check_branch
        %130 = sbr.rel (%p128) target = $region20
      $region19: #{tpu_custom_call.1} parent=5 // pred_region
        // Predicated region
        $region21: #{tpu_custom_call.1} parent=19 // pred_check
          %p131 = pneg %p70
        $region22: #{tpu_custom_call.1} parent=19 // pred_check_branch
          %133 = sbr.rel (%p131) target = $region24
        $region23: #{tpu_custom_call.1} parent=19 // pred_region
          %s134 = sand.u32 %s60, 1
          %s135 = scalar_lea.sflag [#allocation3], %s134
          %s136 = sand.u32 %s60, 1
          %s137 = smul.addr %s136, 64
          %s138 = scalar_lea.vmem [#allocation6], %s137
          %s139 = smul.u32 4, %s23
          %141 = vsyncadd %s135, 0
          %s142 = smul.addr %s22, 8
          %s143 = sadd.s32 %s139, %s142
          %s144 = smul.addr %s143, 8
          %s145 = scalar_lea.hbm %s1, %s144
          %s146 = sshll.u32 %s145, 4
          %s147 = int_to_ptr.hbm [resolvable:$true] %s146
          %s148 = sshll.u32 %s138, 4
          %s149 = int_to_ptr.vmem [resolvable:$true] %s148
          %154 = dma.hbm_to_vmem [thread:$0]  %s147, 1024, %s149, %s135, 128, 128, 8
        $region24: #{tpu_custom_call.1} parent=19 // pred_fallthru
          _
      $region20: #{tpu_custom_call.1} parent=5 // pred_fallthru
        _
      %p155 = scmp.le.s32.totalorder 1, %s15
      %p156 = scmp.lt.s32.totalorder %s15, 7
      %p157 = pnand %p155, %p156
      %p158 = pneg %p157
      // Predicated region
      $region25: #{tpu_custom_call.1} parent=5 // pred_check
        _
      $region26: #{tpu_custom_call.1} parent=5 // pred_check_branch
        %160 = sbr.rel (%p157) target = $region28
      $region27: #{tpu_custom_call.1} parent=5 // pred_region
        %s161 = ssub.s32 %s15, 1
        // Predicated region
        $region29: #{tpu_custom_call.1} parent=27 // pred_check
          %p162 = pneg %p48
        $region30: #{tpu_custom_call.1} parent=27 // pred_check_branch
          %164 = sbr.rel (%p162) target = $region32
        $region31: #{tpu_custom_call.1} parent=27 // pred_region
          %166 = dma.done [#allocation5], 32
        $region32: #{tpu_custom_call.1} parent=27 // pred_fallthru
          _
        %s167 = sand.u32 %s63, 1
        %s168 = scalar_lea.sflag [#allocation3], %s167
        %s169 = sand.u32 %s63, 1
        %s170 = smul.addr %s169, 64
        %s171 = scalar_lea.vmem [#allocation6], %s170
        // Predicated region
        $region33: #{tpu_custom_call.1} parent=27 // pred_check
          %p172 = pneg %p76
        $region34: #{tpu_custom_call.1} parent=27 // pred_check_branch
          %174 = sbr.rel (%p172) target = $region36
        $region35: #{tpu_custom_call.1} parent=27 // pred_region
          %176 = dma.done %s168, 1024
        $region36: #{tpu_custom_call.1} parent=27 // pred_fallthru
          _
        %177 = sfence
        %p178 = pneg %p48
        %p179 = pneg %p45
        %s180 = sand.u32 %s63, 1
        %s181 = scalar_lea.sflag [#allocation3], %s180
        %s182 = sand.u32 %s63, 1
        %s183 = smul.addr %s182, 64
        %s184 = scalar_lea.vmem [#allocation6], %s183
        %p185 = pneg %p76
        %p186 = pneg %p73
        %p187 = pneg %p102
        %p188 = pneg %p99
        %s189 = sand.u32 %s89, 1
        %s190 = scalar_lea.sflag [#allocation4], %s189
        %s191 = sand.u32 %s89, 1
        %s192 = smul.addr %s191, 8
        %s193 = scalar_lea.vmem [#allocation7], %s192
        %s194 = smul.u32 4, %s25
        %p195 = scmp.lt.s32.totalorder %s24, 0
        %s196 = ssub.s32 0, %s24
        %s197 = scalar_select %p195, %s196, %s24
        %s198 = sand.u32 %s197, 1
        %s199 = ssub.s32 0, %s198
        %s200 = scalar_select %p195, %s199, %s198
        %p201 = scmp.ne.s32.totalorder %s200, 0
        %p202 = scmp.lt.s32.totalorder %s200, 0
        %p203 = pnand %p202, %p201
        %p204 = pneg %p203
        %s205 = sadd.s32 %s200, 2
        %s206 = scalar_select %p204, %s205, %s200
        %p207 = scmp.eq.s32.totalorder %s25, 0
        // Predicated region
        $region37: #{tpu_custom_call.1} parent=27 // pred_check
          %p208 = pneg %p207
        $region38: #{tpu_custom_call.1} parent=27 // pred_check_branch
          %210 = sbr.rel (%p208) target = $region40
        $region39: #{tpu_custom_call.1} parent=27 // pred_region
          %211 = vst [vmem:[%s193] sm:$0xff] 0.0
        $region40: #{tpu_custom_call.1} parent=27 // pred_fallthru
          _
        %s212 = smul.u32 %s206, 128
        %s213 = sld [smem:[#allocation2 + %s212]]
        %s214 = sadd.s32 %s212, 1
        %s215 = sld [smem:[#allocation2 + %s214]]
        %s216 = sadd.s32 %s212, 2
        %s217 = sld [smem:[#allocation2 + %s216]]
        %s218 = sadd.s32 %s212, 3
        %s219 = sld [smem:[#allocation2 + %s218]]
        %s220 = sadd.s32 %s212, 4
        %s221 = sld [smem:[#allocation2 + %s220]]
        %s222 = sadd.s32 %s212, 5
        %s223 = sld [smem:[#allocation2 + %s222]]
        %s224 = sadd.s32 %s212, 6
        %s225 = sld [smem:[#allocation2 + %s224]]
        %s226 = sadd.s32 %s212, 7
        %s227 = sld [smem:[#allocation2 + %s226]]
        %s228 = sadd.s32 %s212, 8
        %s229 = sld [smem:[#allocation2 + %s228]]
        %s230 = sadd.s32 %s212, 9
        %s231 = sld [smem:[#allocation2 + %s230]]
        %s232 = sadd.s32 %s212, 10
        %s233 = sld [smem:[#allocation2 + %s232]]
        %s234 = sadd.s32 %s212, 11
        %s235 = sld [smem:[#allocation2 + %s234]]
        %s236 = sadd.s32 %s212, 12
        %s237 = sld [smem:[#allocation2 + %s236]]
        %s238 = sadd.s32 %s212, 13
        %s239 = sld [smem:[#allocation2 + %s238]]
        %s240 = sadd.s32 %s212, 14
        %s241 = sld [smem:[#allocation2 + %s240]]
        %s242 = sadd.s32 %s212, 15
        %s243 = sld [smem:[#allocation2 + %s242]]
        %v244 = vld [vmem:[%s171] sm:$0xff]
        %v245 = vld [vmem:[%s171 + $0x8] sm:$0xff]
        %v246 = vld [vmem:[%s171 + $0x10] sm:$0xff]
        %v247 = vld [vmem:[%s171 + $0x18] sm:$0xff]
        %s248 = sadd.s32 0, 32
        %s249 = scalar_lea.vmem %s171, %s248 [#allocation6]
        %v250 = vld [vmem:[%s249] sm:$0xff]
        %v251 = vld [vmem:[%s249 + $0x8] sm:$0xff]
        %v252 = vld [vmem:[%s249 + $0x10] sm:$0xff]
        %v253 = vld [vmem:[%s249 + $0x18] sm:$0xff]
        %v254 = vmul.f32 %v244, %v244
        %v255 = vmul.f32 %v245, %v245
        %v256 = vmul.f32 %v246, %v246
        %v257 = vmul.f32 %v247, %v247
        %v258 = vmul.f32 %v250, %v250
        %v259 = vmul.f32 %v251, %v251
        %v260 = vmul.f32 %v252, %v252
        %v261 = vmul.f32 %v253, %v253
        %v262 = vadd.f32 %v254, %v258
        %v263 = vadd.f32 %v255, %v259
        %v264 = vadd.f32 %v256, %v260
        %v265 = vadd.f32 %v257, %v261
        %v266 = vrsqrt.pop %v262
        %v267 = vmul.f32 %v266, %v262
        %v268 = vmul.f32 %v267, %v266
        %v269 = vmul.f32 0.5, %v268
        %v270 = vsub.f32 1.5, %v269
        %v271 = vmul.f32 %v266, %v270
        %v272 = vmul.f32 %v262, %v271
        %vm273 = vcmp.eq.f32.partialorder %v262, inf
        %v274 = vsel %vm273, %v262, %v272
        %vm275 = vcmp.eq.f32.partialorder %v262, 0.0
        %v276 = vand.u32 %v262, 2147483648
        %v277 = vsel %vm275, %v276, %v274
        %v278 = vrsqrt.pop %v263
        %v279 = vmul.f32 %v278, %v263
        %v280 = vmul.f32 %v279, %v278
        %v281 = vmul.f32 0.5, %v280
        %v282 = vsub.f32 1.5, %v281
        %v283 = vmul.f32 %v278, %v282
        %v284 = vmul.f32 %v263, %v283
        %vm285 = vcmp.eq.f32.partialorder %v263, inf
        %v286 = vsel %vm285, %v263, %v284
        %vm287 = vcmp.eq.f32.partialorder %v263, 0.0
        %v288 = vand.u32 %v263, 2147483648
        %v289 = vsel %vm287, %v288, %v286
        %v290 = vrsqrt.pop %v264
        %v291 = vmul.f32 %v290, %v264
        %v292 = vmul.f32 %v291, %v290
        %v293 = vmul.f32 0.5, %v292
        %v294 = vsub.f32 1.5, %v293
        %v295 = vmul.f32 %v290, %v294
        %v296 = vmul.f32 %v264, %v295
        %vm297 = vcmp.eq.f32.partialorder %v264, inf
        %v298 = vsel %vm297, %v264, %v296
        %vm299 = vcmp.eq.f32.partialorder %v264, 0.0
        %v300 = vand.u32 %v264, 2147483648
        %v301 = vsel %vm299, %v300, %v298
        %v302 = vrsqrt.pop %v265
        %v303 = vmul.f32 %v302, %v265
        %v304 = vmul.f32 %v303, %v302
        %v305 = vmul.f32 0.5, %v304
        %v306 = vsub.f32 1.5, %v305
        %v307 = vmul.f32 %v302, %v306
        %v308 = vmul.f32 %v265, %v307
        %vm309 = vcmp.eq.f32.partialorder %v265, inf
        %v310 = vsel %vm309, %v265, %v308
        %vm311 = vcmp.eq.f32.partialorder %v265, 0.0
        %v312 = vand.u32 %v265, 2147483648
        %v313 = vsel %vm311, %v312, %v310
        %v314 = vstv %s213
        %v315 = vmul.f32 %v244, %v314
        %v316 = vmul.f32 %v245, %v314
        %v317 = vmul.f32 %v246, %v314
        %v318 = vmul.f32 %v247, %v314
        %v319 = vstv %s229
        %v320 = vmul.f32 %v250, %v319
        %v321 = vmul.f32 %v251, %v319
        %v322 = vmul.f32 %v252, %v319
        %v323 = vmul.f32 %v253, %v319
        %v324 = vadd.f32 %v315, %v320
        %v325 = vadd.f32 %v316, %v321
        %v326 = vadd.f32 %v317, %v322
        %v327 = vadd.f32 %v318, %v323
        %v328 = vstv %s215
        %v329 = vmul.f32 %v244, %v328
        %v330 = vmul.f32 %v245, %v328
        %v331 = vmul.f32 %v246, %v328
        %v332 = vmul.f32 %v247, %v328
        %v333 = vstv %s231
        %v334 = vmul.f32 %v250, %v333
        %v335 = vmul.f32 %v251, %v333
        %v336 = vmul.f32 %v252, %v333
        %v337 = vmul.f32 %v253, %v333
        %v338 = vadd.f32 %v329, %v334
        %v339 = vadd.f32 %v330, %v335
        %v340 = vadd.f32 %v331, %v336
        %v341 = vadd.f32 %v332, %v337
        %v342 = vmax.f32 %v324, %v338
        %v343 = vmax.f32 %v325, %v339
        %v344 = vmax.f32 %v326, %v340
        %v345 = vmax.f32 %v327, %v341
        %v346 = vstv %s217
        %v347 = vmul.f32 %v244, %v346
        %v348 = vmul.f32 %v245, %v346
        %v349 = vmul.f32 %v246, %v346
        %v350 = vmul.f32 %v247, %v346
        %v351 = vstv %s233
        %v352 = vmul.f32 %v250, %v351
        %v353 = vmul.f32 %v251, %v351
        %v354 = vmul.f32 %v252, %v351
        %v355 = vmul.f32 %v253, %v351
        %v356 = vadd.f32 %v347, %v352
        %v357 = vadd.f32 %v348, %v353
        %v358 = vadd.f32 %v349, %v354
        %v359 = vadd.f32 %v350, %v355
        %v360 = vmax.f32 %v342, %v356
        %v361 = vmax.f32 %v343, %v357
        %v362 = vmax.f32 %v344, %v358
        %v363 = vmax.f32 %v345, %v359
        %v364 = vstv %s219
        %v365 = vmul.f32 %v244, %v364
        %v366 = vmul.f32 %v245, %v364
        %v367 = vmul.f32 %v246, %v364
        %v368 = vmul.f32 %v247, %v364
        %v369 = vstv %s235
        %v370 = vmul.f32 %v250, %v369
        %v371 = vmul.f32 %v251, %v369
        %v372 = vmul.f32 %v252, %v369
        %v373 = vmul.f32 %v253, %v369
        %v374 = vadd.f32 %v365, %v370
        %v375 = vadd.f32 %v366, %v371
        %v376 = vadd.f32 %v367, %v372
        %v377 = vadd.f32 %v368, %v373
        %v378 = vmax.f32 %v360, %v374
        %v379 = vmax.f32 %v361, %v375
        %v380 = vmax.f32 %v362, %v376
        %v381 = vmax.f32 %v363, %v377
        %v382 = vstv %s221
        %v383 = vmul.f32 %v244, %v382
        %v384 = vmul.f32 %v245, %v382
        %v385 = vmul.f32 %v246, %v382
        %v386 = vmul.f32 %v247, %v382
        %v387 = vstv %s237
        %v388 = vmul.f32 %v250, %v387
        %v389 = vmul.f32 %v251, %v387
        %v390 = vmul.f32 %v252, %v387
        %v391 = vmul.f32 %v253, %v387
        %v392 = vadd.f32 %v383, %v388
        %v393 = vadd.f32 %v384, %v389
        %v394 = vadd.f32 %v385, %v390
        %v395 = vadd.f32 %v386, %v391
        %v396 = vmax.f32 %v378, %v392
        %v397 = vmax.f32 %v379, %v393
        %v398 = vmax.f32 %v380, %v394
        %v399 = vmax.f32 %v381, %v395
        %v400 = vstv %s223
        %v401 = vmul.f32 %v244, %v400
        %v402 = vmul.f32 %v245, %v400
        %v403 = vmul.f32 %v246, %v400
        %v404 = vmul.f32 %v247, %v400
        %v405 = vstv %s239
        %v406 = vmul.f32 %v250, %v405
        %v407 = vmul.f32 %v251, %v405
        %v408 = vmul.f32 %v252, %v405
        %v409 = vmul.f32 %v253, %v405
        %v410 = vadd.f32 %v401, %v406
        %v411 = vadd.f32 %v402, %v407
        %v412 = vadd.f32 %v403, %v408
        %v413 = vadd.f32 %v404, %v409
        %v414 = vmax.f32 %v396, %v410
        %v415 = vmax.f32 %v397, %v411
        %v416 = vmax.f32 %v398, %v412
        %v417 = vmax.f32 %v399, %v413
        %v418 = vstv %s225
        %v419 = vmul.f32 %v244, %v418
        %v420 = vmul.f32 %v245, %v418
        %v421 = vmul.f32 %v246, %v418
        %v422 = vmul.f32 %v247, %v418
        %v423 = vstv %s241
        %v424 = vmul.f32 %v250, %v423
        %v425 = vmul.f32 %v251, %v423
        %v426 = vmul.f32 %v252, %v423
        %v427 = vmul.f32 %v253, %v423
        %v428 = vadd.f32 %v419, %v424
        %v429 = vadd.f32 %v420, %v425
        %v430 = vadd.f32 %v421, %v426
        %v431 = vadd.f32 %v422, %v427
        %v432 = vmax.f32 %v414, %v428
        %v433 = vmax.f32 %v415, %v429
        %v434 = vmax.f32 %v416, %v430
        %v435 = vmax.f32 %v417, %v431
        %v436 = vstv %s227
        %v437 = vmul.f32 %v244, %v436
        %v438 = vmul.f32 %v245, %v436
        %v439 = vmul.f32 %v246, %v436
        %v440 = vmul.f32 %v247, %v436
        %v441 = vstv %s243
        %v442 = vmul.f32 %v250, %v441
        %v443 = vmul.f32 %v251, %v441
        %v444 = vmul.f32 %v252, %v441
        %v445 = vmul.f32 %v253, %v441
        %v446 = vadd.f32 %v437, %v442
        %v447 = vadd.f32 %v438, %v443
        %v448 = vadd.f32 %v439, %v444
        %v449 = vadd.f32 %v440, %v445
        %v450 = vmax.f32 %v432, %v446
        %v451 = vmax.f32 %v433, %v447
        %v452 = vmax.f32 %v434, %v448
        %v453 = vmax.f32 %v435, %v449
        %v454 = vsub.f32 0.0, %v277
        %v455 = vsub.f32 0.0, %v289
        %v456 = vsub.f32 0.0, %v301
        %v457 = vsub.f32 0.0, %v313
        %v458 = vmul.f32 %v454, %v450
        %v459 = vmul.f32 %v455, %v451
        %v460 = vmul.f32 %v456, %v452
        %v461 = vmul.f32 %v457, %v453
        %v462 = vadd.f32 %v458, %v459
        %v463 = vadd.f32 %v462, %v460
        %v464 = vadd.f32 %v463, %v461
        %v465 = vadd.f32 %v464, 0.0
        %v466 = vld [vmem:[%s193] sm:$0xff]
        %v467 = vadd.f32 %v466, %v465
        %468 = vst [vmem:[%s193] sm:$0xff] %v467
        %s469 = sand.u32 %s89, 1
        %s470 = scalar_lea.sflag [#allocation4], %s469
        %s471 = sand.u32 %s89, 1
        %s472 = smul.addr %s471, 8
        %s473 = scalar_lea.vmem [#allocation7], %s472
        // Predicated region
        $region41: #{tpu_custom_call.1} parent=27 // pred_check
          %p474 = pneg %p99
        $region42: #{tpu_custom_call.1} parent=27 // pred_check_branch
          %476 = sbr.rel (%p474) target = $region44
        $region43: #{tpu_custom_call.1} parent=27 // pred_region
          %478 = vsyncadd %s470, 0
          %s479 = smul.addr %s24, 8
          %s480 = scalar_lea.hbm %s2, %s479
          %s482 = sshll.u32 %s473, 4
          %s483 = int_to_ptr.vmem [resolvable:$true] %s482
          %s484 = sshll.u32 %s480, 4
          %s485 = int_to_ptr.hbm [resolvable:$true] %s484
          %487 = dma.vmem_to_hbm [thread:$0]  %s483, 128, %s485, %s470
        $region44: #{tpu_custom_call.1} parent=27 // pred_fallthru
          _
      $region28: #{tpu_custom_call.1} parent=5 // pred_fallthru
        _
      %p488 = scmp.le.s32.totalorder 2, %s15
      // Predicated region
      $region45: #{tpu_custom_call.1} parent=5 // pred_check
        %p489 = pneg %p488
      $region46: #{tpu_custom_call.1} parent=5 // pred_check_branch
        %491 = sbr.rel (%p489) target = $region48
      $region47: #{tpu_custom_call.1} parent=5 // pred_region
        %s492 = ssub.s32 %s15, 2
        // Predicated region
        $region49: #{tpu_custom_call.1} parent=47 // pred_check
          %p493 = pneg %p105
        $region50: #{tpu_custom_call.1} parent=47 // pred_check_branch
          %495 = sbr.rel (%p493) target = $region52
        $region51: #{tpu_custom_call.1} parent=47 // pred_region
          %s496 = sand.u32 %s90, 1
          %s497 = scalar_lea.sflag [#allocation4], %s496
          %s498 = sand.u32 %s90, 1
          %s499 = smul.addr %s498, 8
          %s500 = scalar_lea.vmem [#allocation7], %s499
          %502 = dma.done %s497, 128
        $region52: #{tpu_custom_call.1} parent=47 // pred_fallthru
          _
      $region48: #{tpu_custom_call.1} parent=5 // pred_fallthru
        _
    $region6: #{tpu_custom_call.1} parent=1 // loop_footer
      %s19 = sadd.s32 1, %s15
    $region7: #{tpu_custom_call.1} parent=1 // loop_footer_branch
      %14 = sbr.rel target = $region3
    $region8: #{tpu_custom_call.1} parent=1 // loop_exit
      _
    %503 = vsyncpa [#allocation3], 1
    %s504 = scalar_lea.sflag [#allocation3], 1
    %505 = vsyncpa %s504, 1
    %506 = vsyncpa [#allocation4], 1
    %s507 = scalar_lea.sflag [#allocation4], 1
    %508 = vsyncpa %s507, 1
    %509 = vsyncpa [#allocation5], 1
    %s510 = scalar_lea.sflag [#allocation5], 1
    %511 = vsyncpa %s510, 1

</llo_original>
